<compile_context>
chip_gen: v7x
topology: tpu7x:2x2x1
jax: 0.10.0
libtpu: 0.0.40
codegen_flags: <defaults>
</compile_context>

<pallas_src>
import functools

import jax
import jax.numpy as jnp
from jax.experimental import pallas as pl
from jax.experimental.pallas import tpu as pltpu

HIDDEN = 128   # fc_1 / fc_2 width (from the PyTorch module)
LANE = 128     # TPU lane width
_MIB = 1024 * 1024


def _round_up(x, m):
    return ((x + m - 1) // m) * m


def _vmem_cap_bytes():
    """Generation-aware VMEM capacity (falls back to the v7x 64 MiB floor)."""
    try:
        return int(pltpu.get_tpu_info().vmem_capacity_bytes)
    except Exception:
        return 64 * _MIB


def mlp_kernel(x_ref, w1_ref, b1_ref, w2_ref, b2_ref, w3_ref, b3_ref, o_ref):
    """One batch tile of the full MLP: bf16 matmuls with f32 accumulation."""
    # Cast the f32 tile to bf16 in VMEM — avoids a separate XLA cast pass over
    # x in HBM (halves total x traffic vs. wrapper-side cast).
    x = x_ref[...].astype(jnp.bfloat16)                        # (TM, in_dim)
    h1 = jnp.dot(x, w1_ref[...], preferred_element_type=jnp.float32)
    h1 = jnp.maximum(h1 + b1_ref[...], 0.0).astype(jnp.bfloat16)
    h2 = jnp.dot(h1, w2_ref[...], preferred_element_type=jnp.float32)
    h2 = jnp.maximum(h2 + b2_ref[...], 0.0).astype(jnp.bfloat16)
    out = jnp.dot(h2, w3_ref[...], preferred_element_type=jnp.float32) + b3_ref[...]
    o_ref[...] = out.astype(o_ref.dtype)                       # lane-dense (TM, out_pad)


@functools.partial(jax.jit, static_argnames=("num_classes",))
def mlp_forward(x_nchw, prepared_params, num_classes):
    """x_nchw: (N, C, H, W) float32. Returns (N, num_classes) float32."""
    w1b, b1, w2b, b2, w3p, b3p = prepared_params
    n = x_nchw.shape[0]
    in_dim = w1b.shape[0]
    out_pad = w3p.shape[1]

    # Flatten NCHW -> (N, C*H*W); identical ordering to torch's x.view(N, -1).
    # Kept in f32 — the bf16 cast is done in-kernel. No batch padding: the
    # ragged last block is handled by the cdiv grid (masked output store).
    x_flat = x_nchw.reshape(n, -1)

    # Batch tile: large (up to 512 rows) to amortize per-step overhead and
    # feed the MXU; multiple of 16 sublanes.
    tm = min(512, _round_up(n, 16))
    n_blocks = pl.cdiv(n, tm)
    if n_blocks == 1 and n > 16:
        # Keep >=2 grid steps so v7x's two TensorCores both get work
        # (harmless on single-TC v5e/v6e).
        tm = _round_up(pl.cdiv(n, 2), 16)
        n_blocks = pl.cdiv(n, tm)
    grid = (n_blocks,)

    # VMEM footprint: double-buffered x/out tiles, resident weights, in-kernel
    # f32/bf16 intermediates, plus a fixed margin for compiler scratch.
    vmem_bytes = (
        2 * tm * in_dim * 4                               # x tiles (f32, 2x buffered)
        + tm * in_dim * 2                                 # bf16 x copy in kernel
        + in_dim * HIDDEN * 2                             # w1 resident (bf16)
        + HIDDEN * HIDDEN * 2 + HIDDEN * out_pad * 2      # w2, w3 resident (bf16)
        + (2 * HIDDEN + out_pad) * 4                      # biases (f32)
        + 2 * tm * HIDDEN * 4 + 2 * tm * HIDDEN * 2       # h1/h2 f32 + bf16 copies
        + tm * out_pad * 4                                # out temp (f32)
        + 2 * tm * out_pad * 4                            # out tiles (f32, 2x buffered)
        + 2 * _MIB                                        # compiler-internal scratch margin
    )
    compiler_kwargs = dict(dimension_semantics=("parallel",))
    vmem_cap = int(_vmem_cap_bytes() * 0.8)   # ~51 MiB on v7x, ~100 MiB on v5e/v6e
    if vmem_bytes > 12 * _MIB:
        # TODO(synk): for very large in_dim where resident w1 + x tile exceed
        # the cap (especially on v7x's 64 MiB VMEM), switch fc1 to a K-tiled
        # reduction over a second "arbitrary" grid axis with an f32 VMEM
        # accumulator instead of keeping w1 fully resident.
        compiler_kwargs["vmem_limit_bytes"] = min(int(vmem_bytes * 1.5), vmem_cap)

    flops = 2 * n * (in_dim * HIDDEN + HIDDEN * HIDDEN + HIDDEN * out_pad)
    bytes_accessed = (
        n * in_dim * 4                                              # x (f32)
        + (in_dim * HIDDEN + HIDDEN * HIDDEN + HIDDEN * out_pad) * 2  # weights (bf16)
        + (2 * HIDDEN + out_pad) * 4                                # biases (f32)
        + n * out_pad * 4                                           # output (f32)
    )
    cost = pl.CostEstimate(flops=flops, transcendentals=0,
                           bytes_accessed=bytes_accessed)

    out_padded = pl.pallas_call(
        mlp_kernel,
        out_shape=jax.ShapeDtypeStruct((n, out_pad), jnp.float32),
        grid=grid,
        in_specs=[
            pl.BlockSpec((tm, in_dim), lambda i: (i, 0)),        # x: per batch tile (f32)
            pl.BlockSpec((in_dim, HIDDEN), lambda i: (0, 0)),    # w1: resident
            pl.BlockSpec((1, HIDDEN), lambda i: (0, 0)),         # b1
            pl.BlockSpec((HIDDEN, HIDDEN), lambda i: (0, 0)),    # w2
            pl.BlockSpec((1, HIDDEN), lambda i: (0, 0)),         # b2
            pl.BlockSpec((HIDDEN, out_pad), lambda i: (0, 0)),   # w3 (lane-padded)
            pl.BlockSpec((1, out_pad), lambda i: (0, 0)),        # b3 (lane-padded)
        ],
        out_specs=pl.BlockSpec((tm, out_pad), lambda i: (i, 0)),
        compiler_params=pltpu.CompilerParams(**compiler_kwargs),
        cost_estimate=cost,
    )(x_flat, w1b, b1, w2b, b2, w3p, b3p)

    # Pallas masks the ragged last batch block, so only the lane padding needs
    # slicing away.
    return out_padded[:, :num_classes]


def prepare_params(params):
    """One-time (outside the per-call jit) bf16 cast + fc3 lane padding."""
    w1, b1, w2, b2, w3, b3 = params
    num_classes = w3.shape[1]
    out_pad = _round_up(num_classes, LANE)
    pad = out_pad - num_classes
    w3p = jnp.pad(w3, ((0, 0), (0, pad))).astype(jnp.bfloat16)
    b3p = jnp.pad(b3, ((0, 0), (0, pad)))
    return (
        w1.astype(jnp.bfloat16), b1,
        w2.astype(jnp.bfloat16), b2,
        w3p, b3p,
    )


def init_params(key, channel, num_classes, im_size):
    """Deterministic init mirroring nn.Linear default (uniform +/- 1/sqrt(fan_in)).

    Weights kept pre-transposed as (in_dim, out_dim); biases as (1, out_dim).
    Stored in f32; prepare_params() casts/pads once for the kernel.
    """
    in_dim = im_size[0] * im_size[1] * channel
    dims = [(in_dim, HIDDEN), (HIDDEN, HIDDEN), (HIDDEN, num_classes)]
    params = []
    for fan_in, fan_out in dims:
        kw, kb, key = jax.random.split(key, 3)
        bound = 1.0 / (fan_in ** 0.5)
        w = jax.random.uniform(kw, (fan_in, fan_out), jnp.float32, -bound, bound)
        b = jax.random.uniform(kb, (1, fan_out), jnp.float32, -bound, bound)
        params += [w, b]
    return tuple(params)


def mlp_reference(x_nchw, params):
    """Pure-JAX reference on the same bf16-inputs / f32-accumulate path."""
    w1, b1, w2, b2, w3, b3 = params
    h = x_nchw.reshape(x_nchw.shape[0], -1).astype(jnp.bfloat16)
    h = jnp.dot(h, w1.astype(jnp.bfloat16), preferred_element_type=jnp.float32) + b1
    h = jnp.maximum(h, 0.0).astype(jnp.bfloat16)
    h = jnp.dot(h, w2.astype(jnp.bfloat16), preferred_element_type=jnp.float32) + b2
    h = jnp.maximum(h, 0.0).astype(jnp.bfloat16)
    return jnp.dot(h, w3.astype(jnp.bfloat16), preferred_element_type=jnp.float32) + b3


if __name__ == "__main__":
    key = jax.random.PRNGKey(0)
    k_x, k_p = jax.random.split(key)

    # Small shapes consistent with the module: channel=4, im_size=(16,16),
    # num_classes=10, batch=2 -> fc_1 input dim = 4*16*16 = 1024.
    batch, channel, H, W = 2, 4, 16, 16
    num_classes = 10

    x = jax.random.normal(k_x, (batch, channel, H, W), jnp.float32)
    params = init_params(k_p, channel, num_classes, (H, W))
    prepared = prepare_params(params)

    out = mlp_forward(x, prepared, num_classes)
    out = jax.block_until_ready(out)

    ref = mlp_reference(x, params)
    assert out.shape == (batch, num_classes)
    assert jnp.allclose(out, ref, atol=1e-2, rtol=1e-2), float(jnp.max(jnp.abs(out - ref)))

    print("KERNEL_OK")
</pallas_src>

<mosaic_0001>
module attributes {stable_mosaic.version = 11 : i64} {
  func.func @mlp_kernel(%arg0: i32, %arg1: memref<16x1024xf32, #tpu.memory_space<vmem>>, %arg2: memref<1024x128xbf16, #tpu.memory_space<vmem>>, %arg3: memref<1x128xf32, #tpu.memory_space<vmem>>, %arg4: memref<128x128xbf16, #tpu.memory_space<vmem>>, %arg5: memref<1x128xf32, #tpu.memory_space<vmem>>, %arg6: memref<128x128xbf16, #tpu.memory_space<vmem>>, %arg7: memref<1x128xf32, #tpu.memory_space<vmem>>, %arg8: memref<16x128xf32, #tpu.memory_space<vmem>>) attributes {dimension_semantics = [#tpu.dimension_semantics<parallel>], iteration_bounds = array<i64: 1>, scalar_prefetch = 0 : i64, scratch_operands = 0 : i64, tpu.core_type = #tpu.core_type<tc>, window_params = [{transform_indices = @transform_0, window_bounds = array<i64: 16, 1024>}, {pipeline_mode = #tpu.pipeline_mode<synchronous>, transform_indices = @transform_1, window_bounds = array<i64: 1024, 128>}, {pipeline_mode = #tpu.pipeline_mode<synchronous>, transform_indices = @transform_2, window_bounds = array<i64: 1, 128>}, {pipeline_mode = #tpu.pipeline_mode<synchronous>, transform_indices = @transform_3, window_bounds = array<i64: 128, 128>}, {pipeline_mode = #tpu.pipeline_mode<synchronous>, transform_indices = @transform_4, window_bounds = array<i64: 1, 128>}, {pipeline_mode = #tpu.pipeline_mode<synchronous>, transform_indices = @transform_5, window_bounds = array<i64: 128, 128>}, {pipeline_mode = #tpu.pipeline_mode<synchronous>, transform_indices = @transform_6, window_bounds = array<i64: 1, 128>}, {transform_indices = @transform_7, window_bounds = array<i64: 16, 128>}]} {
    %c0 = arith.constant 0 : index
    %c0_0 = arith.constant 0 : index
    %0 = vector.load %arg1[%c0, %c0_0] : memref<16x1024xf32, #tpu.memory_space<vmem>>, vector<16x1024xf32>
    %1 = arith.truncf %0 : vector<16x1024xf32> to vector<16x1024xbf16>
    %c0_1 = arith.constant 0 : index
    %c0_2 = arith.constant 0 : index
    %2 = vector.load %arg2[%c0_1, %c0_2] : memref<1024x128xbf16, #tpu.memory_space<vmem>>, vector<1024x128xbf16>
    %cst = arith.constant dense<0.000000e+00> : vector<16x128xf32>
    %3 = tpu.matmul %1, %2, %cst {dimension_numbers = #tpu.dot_dimension_numbers<[1], [0], [0], [1], [0, 0, 1, 1], [], []>} : vector<16x1024xbf16>, vector<1024x128xbf16>, vector<16x128xf32> -> vector<16x128xf32>
    %c0_3 = arith.constant 0 : index
    %c0_4 = arith.constant 0 : index
    %4 = vector.load %arg3[%c0_3, %c0_4] : memref<1x128xf32, #tpu.memory_space<vmem>>, vector<1x128xf32>
    %5 = vector.broadcast %4 : vector<1x128xf32> to vector<16x128xf32>
    %6 = arith.addf %3, %5 : vector<16x128xf32>
    %cst_5 = arith.constant 0.000000e+00 : f32
    %7 = vector.broadcast %cst_5 : f32 to vector<16x128xf32>
    %8 = arith.maximumf %6, %7 : vector<16x128xf32>
    %9 = arith.truncf %8 : vector<16x128xf32> to vector<16x128xbf16>
    %c0_6 = arith.constant 0 : index
    %c0_7 = arith.constant 0 : index
    %10 = vector.load %arg4[%c0_6, %c0_7] : memref<128x128xbf16, #tpu.memory_space<vmem>>, vector<128x128xbf16>
    %cst_8 = arith.constant dense<0.000000e+00> : vector<16x128xf32>
    %11 = tpu.matmul %9, %10, %cst_8 {dimension_numbers = #tpu.dot_dimension_numbers<[1], [0], [0], [1], [0, 0, 1, 1], [], []>} : vector<16x128xbf16>, vector<128x128xbf16>, vector<16x128xf32> -> vector<16x128xf32>
    %c0_9 = arith.constant 0 : index
    %c0_10 = arith.constant 0 : index
    %12 = vector.load %arg5[%c0_9, %c0_10] : memref<1x128xf32, #tpu.memory_space<vmem>>, vector<1x128xf32>
    %13 = vector.broadcast %12 : vector<1x128xf32> to vector<16x128xf32>
    %14 = arith.addf %11, %13 : vector<16x128xf32>
    %cst_11 = arith.constant 0.000000e+00 : f32
    %15 = vector.broadcast %cst_11 : f32 to vector<16x128xf32>
    %16 = arith.maximumf %14, %15 : vector<16x128xf32>
    %17 = arith.truncf %16 : vector<16x128xf32> to vector<16x128xbf16>
    %c0_12 = arith.constant 0 : index
    %c0_13 = arith.constant 0 : index
    %18 = vector.load %arg6[%c0_12, %c0_13] : memref<128x128xbf16, #tpu.memory_space<vmem>>, vector<128x128xbf16>
    %cst_14 = arith.constant dense<0.000000e+00> : vector<16x128xf32>
    %19 = tpu.matmul %17, %18, %cst_14 {dimension_numbers = #tpu.dot_dimension_numbers<[1], [0], [0], [1], [0, 0, 1, 1], [], []>} : vector<16x128xbf16>, vector<128x128xbf16>, vector<16x128xf32> -> vector<16x128xf32>
    %c0_15 = arith.constant 0 : index
    %c0_16 = arith.constant 0 : index
    %20 = vector.load %arg7[%c0_15, %c0_16] : memref<1x128xf32, #tpu.memory_space<vmem>>, vector<1x128xf32>
    %21 = vector.broadcast %20 : vector<1x128xf32> to vector<16x128xf32>
    %22 = arith.addf %19, %21 : vector<16x128xf32>
    %c0_17 = arith.constant 0 : index
    %c0_18 = arith.constant 0 : index
    %23 = vector.load %arg8[%c0_17, %c0_18] : memref<16x128xf32, #tpu.memory_space<vmem>>, vector<16x128xf32>
    tpu.vector_store %arg8[%c0_17, %c0_18], %22 {strides = array<i32>} : memref<16x128xf32, #tpu.memory_space<vmem>>, vector<16x128xf32>,
    return
  }
  func.func @transform_0(%arg0: i32) -> (i32, i32) {
    %c0_i32 = arith.constant 0 : i32
    %c0_i32_0 = arith.constant 0 : i32
    return %arg0, %c0_i32 : i32, i32
  }
  func.func @transform_1(%arg0: i32) -> (i32, i32) {
    %c0_i32 = arith.constant 0 : i32
    %c0_i32_0 = arith.constant 0 : i32
    %c0_i32_1 = arith.constant 0 : i32
    return %c0_i32, %c0_i32_0 : i32, i32
  }
  func.func @transform_2(%arg0: i32) -> (i32, i32) {
    %c0_i32 = arith.constant 0 : i32
    %c0_i32_0 = arith.constant 0 : i32
    %c0_i32_1 = arith.constant 0 : i32
    return %c0_i32, %c0_i32_0 : i32, i32
  }
  func.func @transform_3(%arg0: i32) -> (i32, i32) {
    %c0_i32 = arith.constant 0 : i32
    %c0_i32_0 = arith.constant 0 : i32
    %c0_i32_1 = arith.constant 0 : i32
    return %c0_i32, %c0_i32_0 : i32, i32
  }
  func.func @transform_4(%arg0: i32) -> (i32, i32) {
    %c0_i32 = arith.constant 0 : i32
    %c0_i32_0 = arith.constant 0 : i32
    %c0_i32_1 = arith.constant 0 : i32
    return %c0_i32, %c0_i32_0 : i32, i32
  }
  func.func @transform_5(%arg0: i32) -> (i32, i32) {
    %c0_i32 = arith.constant 0 : i32
    %c0_i32_0 = arith.constant 0 : i32
    %c0_i32_1 = arith.constant 0 : i32
    return %c0_i32, %c0_i32_0 : i32, i32
  }
  func.func @transform_6(%arg0: i32) -> (i32, i32) {
    %c0_i32 = arith.constant 0 : i32
    %c0_i32_0 = arith.constant 0 : i32
    %c0_i32_1 = arith.constant 0 : i32
    return %c0_i32, %c0_i32_0 : i32, i32
  }
  func.func @transform_7(%arg0: i32) -> (i32, i32) {
    %c0_i32 = arith.constant 0 : i32
    %c0_i32_0 = arith.constant 0 : i32
    return %arg0, %c0_i32 : i32, i32
  }
}

</mosaic_0001>

<llo_original>
// kernel: mlp_forward.1
$region0: #{mlp_forward.1}
  #allocation0 [shape = 'u32[]', space=smem, size = 0x4, offset = 0x4, fixed_abs, tag = 'smem constant byte address 0x4 - core index']
  #allocation1 [shape = 'u32[144,128]{1,0:T(1,128)}', space=vmem, size = 0x12000, scoped, tag = 'internal scratch']
  %s0 = inlined_call_operand.vmem [shape: f32[2,1024], index: 0, kind: input, shape index: {}]
  %s1 = inlined_call_operand.hbm [shape: bf16[1024,128], index: 1, kind: input, shape index: {}]
  %s2 = inlined_call_operand.vmem [shape: f32[1,128], index: 2, kind: input, shape index: {}]
  %s3 = inlined_call_operand.vmem [shape: bf16[128,128], index: 3, kind: input, shape index: {}]
  %s4 = inlined_call_operand.vmem [shape: f32[1,128], index: 4, kind: input, shape index: {}]
  %s5 = inlined_call_operand.vmem [shape: bf16[128,128], index: 5, kind: input, shape index: {}]
  %s6 = inlined_call_operand.vmem [shape: f32[1,128], index: 6, kind: input, shape index: {}]
  %s7 = inlined_call_operand.hbm [shape: f32[2,128], index: 7, kind: output, shape index: {}]
  %s8 = sld [smem:[#allocation0]]
  $region42: #{mlp_forward.1} parent=0
    _
  %s10 = ssub.s32 1, %s8
  %s11 = scalar_select 0, %s10, %s8
  $region1: #{mlp_forward.1} parent=0
    #allocation2 [shape = 'u8[262144]{0}', space=vmem, size = 0x40000, scoped, tag = 'input window, operand 1, single buffered']
    #allocation3 [shape = 's32[1]{0}', space=sflag, size = 0x4, scoped, tag = 'scoped memory for mlp_forward.1']
    #allocation4 [shape = 's32[1]{0}', space=sflag, size = 0x4, scoped, tag = 'scoped memory for mlp_forward.1']
    #allocation5 [shape = 'u8[8192]{0}', space=vmem, size = 0x2000, scoped, tag = 'output window, operand 0, single buffered']
    %12 = vsyncpa [#allocation3], 0
    %13 = vsyncpa [#allocation4], 0
    // Predicated region
    $region2: #{mlp_forward.1} parent=1 // pred_check
      _
    $region3: #{mlp_forward.1} parent=1 // pred_check_branch
      %15 = sbr.rel (0) target = $region5
    $region4: #{mlp_forward.1} parent=1 // pred_region
      _
    $region5: #{mlp_forward.1} parent=1 // pred_fallthru
      _
    // Predicated region
    $region6: #{mlp_forward.1} parent=1 // pred_check
      _
    $region7: #{mlp_forward.1} parent=1 // pred_check_branch
      %17 = sbr.rel (0) target = $region9
    $region8: #{mlp_forward.1} parent=1 // pred_region
      %s19 = ssub.s32 8192, 8192
      %20 = vsyncadd [#allocation3], %s19
      %s21 = sshll.u32 [#allocation2], 4
      %s22 = int_to_ptr.vmem [resolvable:$true] %s21
      %27 = dma.hbm_to_vmem [thread:$0]  %s1, 8192, %s22, [#allocation3], 64, 64, 4
    $region9: #{mlp_forward.1} parent=1 // pred_fallthru
      _
    // Predicated region
    $region10: #{mlp_forward.1} parent=1 // pred_check
      _
    $region11: #{mlp_forward.1} parent=1 // pred_check_branch
      %29 = sbr.rel (0) target = $region13
    $region12: #{mlp_forward.1} parent=1 // pred_region
      _
    $region13: #{mlp_forward.1} parent=1 // pred_fallthru
      _
    // Predicated region
    $region14: #{mlp_forward.1} parent=1 // pred_check
      _
    $region15: #{mlp_forward.1} parent=1 // pred_check_branch
      %31 = sbr.rel (0) target = $region17
    $region16: #{mlp_forward.1} parent=1 // pred_region
      _
    $region17: #{mlp_forward.1} parent=1 // pred_fallthru
      _
    // Predicated region
    $region18: #{mlp_forward.1} parent=1 // pred_check
      _
    $region19: #{mlp_forward.1} parent=1 // pred_check_branch
      %33 = sbr.rel (0) target = $region21
    $region20: #{mlp_forward.1} parent=1 // pred_region
      _
    $region21: #{mlp_forward.1} parent=1 // pred_fallthru
      _
    // Predicated region
    $region22: #{mlp_forward.1} parent=1 // pred_check
      _
    $region23: #{mlp_forward.1} parent=1 // pred_check_branch
      %35 = sbr.rel (0) target = $region25
    $region24: #{mlp_forward.1} parent=1 // pred_region
      _
    $region25: #{mlp_forward.1} parent=1 // pred_fallthru
      _
    // Predicated region
    $region26: #{mlp_forward.1} parent=1 // pred_check
      _
    $region27: #{mlp_forward.1} parent=1 // pred_check_branch
      %37 = sbr.rel (0) target = $region29
    $region28: #{mlp_forward.1} parent=1 // pred_region
      _
    $region29: #{mlp_forward.1} parent=1 // pred_fallthru
      _
    // Predicated region
    $region30: #{mlp_forward.1} parent=1 // pred_check
      _
    $region31: #{mlp_forward.1} parent=1 // pred_check_branch
      %39 = sbr.rel (0) target = $region33
    $region32: #{mlp_forward.1} parent=1 // pred_region
      %40 = dma.done [#allocation3], 8192
    $region33: #{mlp_forward.1} parent=1 // pred_fallthru
      _
    %v42 = vld [vmem:[%s0] sm:$0xff]
    %v43 = vld [vmem:[%s0 + $0x8] sm:$0xff]
    %v44 = vld [vmem:[%s0 + $0x10] sm:$0xff]
    %v45 = vld [vmem:[%s0 + $0x18] sm:$0xff]
    %v46 = vld [vmem:[%s0 + $0x20] sm:$0xff]
    %v47 = vld [vmem:[%s0 + $0x28] sm:$0xff]
    %v48 = vld [vmem:[%s0 + $0x30] sm:$0xff]
    %v49 = vld [vmem:[%s0 + $0x38] sm:$0xff]
    %v50 = vld [vmem:[%s0 + $0x40] sm:$0xff]
    %v51 = vld [vmem:[%s0 + $0x48] sm:$0xff]
    %v52 = vld [vmem:[%s0 + $0x50] sm:$0xff]
    %v53 = vld [vmem:[%s0 + $0x58] sm:$0xff]
    %v54 = vld [vmem:[%s0 + $0x60] sm:$0xff]
    %v55 = vld [vmem:[%s0 + $0x68] sm:$0xff]
    %v56 = vld [vmem:[%s0 + $0x70] sm:$0xff]
    %v57 = vld [vmem:[%s0 + $0x78] sm:$0xff]
    %v74 = vcombine.low %v42, %v44
    %v75 = vcombine.high %v42, %v44
    %v76 = vcombine.low %v46, %v48
    %v77 = vcombine.high %v46, %v48
    %v79 = vunpack.c.l.s4 1983009808
    %v80 = vunpack.c.0.s8 %v79
    %v81 = vlaneseq
    %v82 = vshrl.u32 %v81, 7
    %v83 = vsub.s32 %v80, %v82
    %v84 = vrot.slane %v74, %v83
    %v86 = vunpack.c.l.s4 1983009808
    %v87 = vunpack.c.0.s8 %v86
    %v88 = vlaneseq
    %v89 = vshrl.u32 %v88, 7
    %v90 = vsub.s32 %v87, %v89
    %v91 = vrot.slane %v75, %v90
    %v93 = vunpack.c.l.s4 1983009808
    %v94 = vunpack.c.0.s8 %v93
    %v95 = vlaneseq
    %v96 = vshrl.u32 %v95, 7
    %v97 = vsub.s32 %v94, %v96
    %v98 = vrot.slane %v76, %v97
    %v100 = vunpack.c.l.s4 1983009808
    %v101 = vunpack.c.0.s8 %v100
    %v102 = vlaneseq
    %v103 = vshrl.u32 %v102, 7
    %v104 = vsub.s32 %v101, %v103
    %v105 = vrot.slane %v77, %v104
    %v106 = vcombine.low %v84, %v98
    %v107 = vcombine.high %v84, %v98
    %v108 = vcombine.low %v91, %v105
    %v109 = vcombine.high %v91, %v105
    %v110 = vcombine.low %v43, %v45
    %v111 = vcombine.high %v43, %v45
    %v112 = vcombine.low %v47, %v49
    %v113 = vcombine.high %v47, %v49
    %v115 = vunpack.c.l.s4 1983009808
    %v116 = vunpack.c.0.s8 %v115
    %v117 = vlaneseq
    %v118 = vshrl.u32 %v117, 7
    %v119 = vsub.s32 %v116, %v118
    %v120 = vrot.slane %v110, %v119
    %v122 = vunpack.c.l.s4 1983009808
    %v123 = vunpack.c.0.s8 %v122
    %v124 = vlaneseq
    %v125 = vshrl.u32 %v124, 7
    %v126 = vsub.s32 %v123, %v125
    %v127 = vrot.slane %v111, %v126
    %v129 = vunpack.c.l.s4 1983009808
    %v130 = vunpack.c.0.s8 %v129
    %v131 = vlaneseq
    %v132 = vshrl.u32 %v131, 7
    %v133 = vsub.s32 %v130, %v132
    %v134 = vrot.slane %v112, %v133
    %v136 = vunpack.c.l.s4 1983009808
    %v137 = vunpack.c.0.s8 %v136
    %v138 = vlaneseq
    %v139 = vshrl.u32 %v138, 7
    %v140 = vsub.s32 %v137, %v139
    %v141 = vrot.slane %v113, %v140
    %v142 = vcombine.low %v120, %v134
    %v143 = vcombine.high %v120, %v134
    %v144 = vcombine.low %v127, %v141
    %v145 = vcombine.high %v127, %v141
    %v146 = vcombine.low %v50, %v52
    %v147 = vcombine.high %v50, %v52
    %v148 = vcombine.low %v54, %v56
    %v149 = vcombine.high %v54, %v56
    %v151 = vunpack.c.l.s4 1983009808
    %v152 = vunpack.c.0.s8 %v151
    %v153 = vlaneseq
    %v154 = vshrl.u32 %v153, 7
    %v155 = vsub.s32 %v152, %v154
    %v156 = vrot.slane %v146, %v155
    %v158 = vunpack.c.l.s4 1983009808
    %v159 = vunpack.c.0.s8 %v158
    %v160 = vlaneseq
    %v161 = vshrl.u32 %v160, 7
    %v162 = vsub.s32 %v159, %v161
    %v163 = vrot.slane %v147, %v162
    %v165 = vunpack.c.l.s4 1983009808
    %v166 = vunpack.c.0.s8 %v165
    %v167 = vlaneseq
    %v168 = vshrl.u32 %v167, 7
    %v169 = vsub.s32 %v166, %v168
    %v170 = vrot.slane %v148, %v169
    %v172 = vunpack.c.l.s4 1983009808
    %v173 = vunpack.c.0.s8 %v172
    %v174 = vlaneseq
    %v175 = vshrl.u32 %v174, 7
    %v176 = vsub.s32 %v173, %v175
    %v177 = vrot.slane %v149, %v176
    %v178 = vcombine.low %v156, %v170
    %v179 = vcombine.high %v156, %v170
    %v180 = vcombine.low %v163, %v177
    %v181 = vcombine.high %v163, %v177
    %v182 = vcombine.low %v51, %v53
    %v183 = vcombine.high %v51, %v53
    %v184 = vcombine.low %v55, %v57
    %v185 = vcombine.high %v55, %v57
    %v187 = vunpack.c.l.s4 1983009808
    %v188 = vunpack.c.0.s8 %v187
    %v189 = vlaneseq
    %v190 = vshrl.u32 %v189, 7
    %v191 = vsub.s32 %v188, %v190
    %v192 = vrot.slane %v182, %v191
    %v194 = vunpack.c.l.s4 1983009808
    %v195 = vunpack.c.0.s8 %v194
    %v196 = vlaneseq
    %v197 = vshrl.u32 %v196, 7
    %v198 = vsub.s32 %v195, %v197
    %v199 = vrot.slane %v183, %v198
    %v201 = vunpack.c.l.s4 1983009808
    %v202 = vunpack.c.0.s8 %v201
    %v203 = vlaneseq
    %v204 = vshrl.u32 %v203, 7
    %v205 = vsub.s32 %v202, %v204
    %v206 = vrot.slane %v184, %v205
    %v208 = vunpack.c.l.s4 1983009808
    %v209 = vunpack.c.0.s8 %v208
    %v210 = vlaneseq
    %v211 = vshrl.u32 %v210, 7
    %v212 = vsub.s32 %v209, %v211
    %v213 = vrot.slane %v185, %v212
    %v214 = vcombine.low %v192, %v206
    %v215 = vcombine.high %v192, %v206
    %v216 = vcombine.low %v199, %v213
    %v217 = vcombine.high %v199, %v213
    %v234 = vpack.c.bf16 %v178, %v106
    %v235 = vpack.c.bf16 %v179, %v107
    %v236 = vpack.c.bf16 %v180, %v108
    %v237 = vpack.c.bf16 %v181, %v109
    %v238 = vpack.c.bf16 %v214, %v142
    %v239 = vpack.c.bf16 %v215, %v143
    %v240 = vpack.c.bf16 %v216, %v144
    %v241 = vpack.c.bf16 %v217, %v145
    %v242 = vld [vmem:[#allocation2] sm:$0xf]
    %v243 = vld [vmem:[#allocation2 + $0x4] sm:$0xf]
    %v244 = vld [vmem:[#allocation2 + $0x8] sm:$0xf]
    %v245 = vld [vmem:[#allocation2 + $0xc] sm:$0xf]
    %v246 = vld [vmem:[#allocation2 + $0x10] sm:$0xf]
    %v247 = vld [vmem:[#allocation2 + $0x14] sm:$0xf]
    %v248 = vld [vmem:[#allocation2 + $0x18] sm:$0xf]
    %v249 = vld [vmem:[#allocation2 + $0x1c] sm:$0xf]
    %v250 = vld [vmem:[#allocation2 + $0x20] sm:$0xf]
    %v251 = vld [vmem:[#allocation2 + $0x24] sm:$0xf]
    %v252 = vld [vmem:[#allocation2 + $0x28] sm:$0xf]
    %v253 = vld [vmem:[#allocation2 + $0x2c] sm:$0xf]
    %v254 = vld [vmem:[#allocation2 + $0x30] sm:$0xf]
    %v255 = vld [vmem:[#allocation2 + $0x34] sm:$0xf]
    %v256 = vld [vmem:[#allocation2 + $0x38] sm:$0xf]
    %v257 = vld [vmem:[#allocation2 + $0x3c] sm:$0xf]
    %v258 = vld [vmem:[#allocation2 + $0x40] sm:$0xf]
    %v259 = vld [vmem:[#allocation2 + $0x44] sm:$0xf]
    %v260 = vld [vmem:[#allocation2 + $0x48] sm:$0xf]
    %v261 = vld [vmem:[#allocation2 + $0x4c] sm:$0xf]
    %v262 = vld [vmem:[#allocation2 + $0x50] sm:$0xf]
    %v263 = vld [vmem:[#allocation2 + $0x54] sm:$0xf]
    %v264 = vld [vmem:[#allocation2 + $0x58] sm:$0xf]
    %v265 = vld [vmem:[#allocation2 + $0x5c] sm:$0xf]
    %v266 = vld [vmem:[#allocation2 + $0x60] sm:$0xf]
    %v267 = vld [vmem:[#allocation2 + $0x64] sm:$0xf]
    %v268 = vld [vmem:[#allocation2 + $0x68] sm:$0xf]
    %v269 = vld [vmem:[#allocation2 + $0x6c] sm:$0xf]
    %v270 = vld [vmem:[#allocation2 + $0x70] sm:$0xf]
    %v271 = vld [vmem:[#allocation2 + $0x74] sm:$0xf]
    %v272 = vld [vmem:[#allocation2 + $0x78] sm:$0xf]
    %v273 = vld [vmem:[#allocation2 + $0x7c] sm:$0xf]
    %v274 = vld [vmem:[#allocation2 + $0x80] sm:$0xf]
    %v275 = vld [vmem:[#allocation2 + $0x84] sm:$0xf]
    %v276 = vld [vmem:[#allocation2 + $0x88] sm:$0xf]
    %v277 = vld [vmem:[#allocation2 + $0x8c] sm:$0xf]
    %v278 = vld [vmem:[#allocation2 + $0x90] sm:$0xf]
    %v279 = vld [vmem:[#allocation2 + $0x94] sm:$0xf]
    %v280 = vld [vmem:[#allocation2 + $0x98] sm:$0xf]
    %v281 = vld [vmem:[#allocation2 + $0x9c] sm:$0xf]
    %v282 = vld [vmem:[#allocation2 + $0xa0] sm:$0xf]
    %v283 = vld [vmem:[#allocation2 + $0xa4] sm:$0xf]
    %v284 = vld [vmem:[#allocation2 + $0xa8] sm:$0xf]
    %v285 = vld [vmem:[#allocation2 + $0xac] sm:$0xf]
    %v286 = vld [vmem:[#allocation2 + $0xb0] sm:$0xf]
    %v287 = vld [vmem:[#allocation2 + $0xb4] sm:$0xf]
    %v288 = vld [vmem:[#allocation2 + $0xb8] sm:$0xf]
    %v289 = vld [vmem:[#allocation2 + $0xbc] sm:$0xf]
    %v290 = vld [vmem:[#allocation2 + $0xc0] sm:$0xf]
    %v291 = vld [vmem:[#allocation2 + $0xc4] sm:$0xf]
    %v292 = vld [vmem:[#allocation2 + $0xc8] sm:$0xf]
    %v293 = vld [vmem:[#allocation2 + $0xcc] sm:$0xf]
    %v294 = vld [vmem:[#allocation2 + $0xd0] sm:$0xf]
    %v295 = vld [vmem:[#allocation2 + $0xd4] sm:$0xf]
    %v296 = vld [vmem:[#allocation2 + $0xd8] sm:$0xf]
    %v297 = vld [vmem:[#allocation2 + $0xdc] sm:$0xf]
    %v298 = vld [vmem:[#allocation2 + $0xe0] sm:$0xf]
    %v299 = vld [vmem:[#allocation2 + $0xe4] sm:$0xf]
    %v300 = vld [vmem:[#allocation2 + $0xe8] sm:$0xf]
    %v301 = vld [vmem:[#allocation2 + $0xec] sm:$0xf]
    %v302 = vld [vmem:[#allocation2 + $0xf0] sm:$0xf]
    %v303 = vld [vmem:[#allocation2 + $0xf4] sm:$0xf]
    %v304 = vld [vmem:[#allocation2 + $0xf8] sm:$0xf]
    %v305 = vld [vmem:[#allocation2 + $0xfc] sm:$0xf]
    %v306 = vld [vmem:[#allocation2 + $0x100] sm:$0xf]
    %v307 = vld [vmem:[#allocation2 + $0x104] sm:$0xf]
    %v308 = vld [vmem:[#allocation2 + $0x108] sm:$0xf]
    %v309 = vld [vmem:[#allocation2 + $0x10c] sm:$0xf]
    %v310 = vld [vmem:[#allocation2 + $0x110] sm:$0xf]
    %v311 = vld [vmem:[#allocation2 + $0x114] sm:$0xf]
    %v312 = vld [vmem:[#allocation2 + $0x118] sm:$0xf]
    %v313 = vld [vmem:[#allocation2 + $0x11c] sm:$0xf]
    %v314 = vld [vmem:[#allocation2 + $0x120] sm:$0xf]
    %v315 = vld [vmem:[#allocation2 + $0x124] sm:$0xf]
    %v316 = vld [vmem:[#allocation2 + $0x128] sm:$0xf]
    %v317 = vld [vmem:[#allocation2 + $0x12c] sm:$0xf]
    %v318 = vld [vmem:[#allocation2 + $0x130] sm:$0xf]
    %v319 = vld [vmem:[#allocation2 + $0x134] sm:$0xf]
    %v320 = vld [vmem:[#allocation2 + $0x138] sm:$0xf]
    %v321 = vld [vmem:[#allocation2 + $0x13c] sm:$0xf]
    %v322 = vld [vmem:[#allocation2 + $0x140] sm:$0xf]
    %v323 = vld [vmem:[#allocation2 + $0x144] sm:$0xf]
    %v324 = vld [vmem:[#allocation2 + $0x148] sm:$0xf]
    %v325 = vld [vmem:[#allocation2 + $0x14c] sm:$0xf]
    %v326 = vld [vmem:[#allocation2 + $0x150] sm:$0xf]
    %v327 = vld [vmem:[#allocation2 + $0x154] sm:$0xf]
    %v328 = vld [vmem:[#allocation2 + $0x158] sm:$0xf]
    %v329 = vld [vmem:[#allocation2 + $0x15c] sm:$0xf]
    %v330 = vld [vmem:[#allocation2 + $0x160] sm:$0xf]
    %v331 = vld [vmem:[#allocation2 + $0x164] sm:$0xf]
    %v332 = vld [vmem:[#allocation2 + $0x168] sm:$0xf]
    %v333 = vld [vmem:[#allocation2 + $0x16c] sm:$0xf]
    %v334 = vld [vmem:[#allocation2 + $0x170] sm:$0xf]
    %v335 = vld [vmem:[#allocation2 + $0x174] sm:$0xf]
    %v336 = vld [vmem:[#allocation2 + $0x178] sm:$0xf]
    %v337 = vld [vmem:[#allocation2 + $0x17c] sm:$0xf]
    %v338 = vld [vmem:[#allocation2 + $0x180] sm:$0xf]
    %v339 = vld [vmem:[#allocation2 + $0x184] sm:$0xf]
    %v340 = vld [vmem:[#allocation2 + $0x188] sm:$0xf]
    %v341 = vld [vmem:[#allocation2 + $0x18c] sm:$0xf]
    %v342 = vld [vmem:[#allocation2 + $0x190] sm:$0xf]
    %v343 = vld [vmem:[#allocation2 + $0x194] sm:$0xf]
    %v344 = vld [vmem:[#allocation2 + $0x198] sm:$0xf]
    %v345 = vld [vmem:[#allocation2 + $0x19c] sm:$0xf]
    %v346 = vld [vmem:[#allocation2 + $0x1a0] sm:$0xf]
    %v347 = vld [vmem:[#allocation2 + $0x1a4] sm:$0xf]
    %v348 = vld [vmem:[#allocation2 + $0x1a8] sm:$0xf]
    %v349 = vld [vmem:[#allocation2 + $0x1ac] sm:$0xf]
    %v350 = vld [vmem:[#allocation2 + $0x1b0] sm:$0xf]
    %v351 = vld [vmem:[#allocation2 + $0x1b4] sm:$0xf]
    %v352 = vld [vmem:[#allocation2 + $0x1b8] sm:$0xf]
    %v353 = vld [vmem:[#allocation2 + $0x1bc] sm:$0xf]
    %v354 = vld [vmem:[#allocation2 + $0x1c0] sm:$0xf]
    %v355 = vld [vmem:[#allocation2 + $0x1c4] sm:$0xf]
    %v356 = vld [vmem:[#allocation2 + $0x1c8] sm:$0xf]
    %v357 = vld [vmem:[#allocation2 + $0x1cc] sm:$0xf]
    %v358 = vld [vmem:[#allocation2 + $0x1d0] sm:$0xf]
    %v359 = vld [vmem:[#allocation2 + $0x1d4] sm:$0xf]
    %v360 = vld [vmem:[#allocation2 + $0x1d8] sm:$0xf]
    %v361 = vld [vmem:[#allocation2 + $0x1dc] sm:$0xf]
    %v362 = vld [vmem:[#allocation2 + $0x1e0] sm:$0xf]
    %v363 = vld [vmem:[#allocation2 + $0x1e4] sm:$0xf]
    %v364 = vld [vmem:[#allocation2 + $0x1e8] sm:$0xf]
    %v365 = vld [vmem:[#allocation2 + $0x1ec] sm:$0xf]
    %v366 = vld [vmem:[#allocation2 + $0x1f0] sm:$0xf]
    %v367 = vld [vmem:[#allocation2 + $0x1f4] sm:$0xf]
    %v368 = vld [vmem:[#allocation2 + $0x1f8] sm:$0xf]
    %v369 = vld [vmem:[#allocation2 + $0x1fc] sm:$0xf]
    %v370 = vld [vmem:[%s2] sm:$0x1]
    %v372 = vlaneseq
    %v373 = vshrl.u32 %v372, 7
    %v374 = vsub.s32 0, %v373
    %v375 = vrot.slane %v370, %v374
    %v505 = vunpack.c.l.b16 %v242
    %v506 = vunpack.c.l.b16 %v243
    %v507 = vunpack.c.l.b16 %v244
    %v508 = vunpack.c.l.b16 %v245
    %v509 = vunpack.c.l.b16 %v246
    %v510 = vunpack.c.l.b16 %v247
    %v511 = vunpack.c.l.b16 %v248
    %v512 = vunpack.c.l.b16 %v249
    %v513 = vunpack.c.l.b16 %v250
    %v514 = vunpack.c.l.b16 %v251
    %v515 = vunpack.c.l.b16 %v252
    %v516 = vunpack.c.l.b16 %v253
    %v517 = vunpack.c.l.b16 %v254
    %v518 = vunpack.c.l.b16 %v255
    %v519 = vunpack.c.l.b16 %v256
    %v520 = vunpack.c.l.b16 %v257
    %v521 = vunpack.c.l.b16 %v258
    %v522 = vunpack.c.l.b16 %v259
    %v523 = vunpack.c.l.b16 %v260
    %v524 = vunpack.c.l.b16 %v261
    %v525 = vunpack.c.l.b16 %v262
    %v526 = vunpack.c.l.b16 %v263
    %v527 = vunpack.c.l.b16 %v264
    %v528 = vunpack.c.l.b16 %v265
    %v529 = vunpack.c.l.b16 %v266
    %v530 = vunpack.c.l.b16 %v267
    %v531 = vunpack.c.l.b16 %v268
    %v532 = vunpack.c.l.b16 %v269
    %v533 = vunpack.c.l.b16 %v270
    %v534 = vunpack.c.l.b16 %v271
    %v535 = vunpack.c.l.b16 %v272
    %v536 = vunpack.c.l.b16 %v273
    %v537 = vunpack.c.l.b16 %v274
    %v538 = vunpack.c.l.b16 %v275
    %v539 = vunpack.c.l.b16 %v276
    %v540 = vunpack.c.l.b16 %v277
    %v541 = vunpack.c.l.b16 %v278
    %v542 = vunpack.c.l.b16 %v279
    %v543 = vunpack.c.l.b16 %v280
    %v544 = vunpack.c.l.b16 %v281
    %v545 = vunpack.c.l.b16 %v282
    %v546 = vunpack.c.l.b16 %v283
    %v547 = vunpack.c.l.b16 %v284
    %v548 = vunpack.c.l.b16 %v285
    %v549 = vunpack.c.l.b16 %v286
    %v550 = vunpack.c.l.b16 %v287
    %v551 = vunpack.c.l.b16 %v288
    %v552 = vunpack.c.l.b16 %v289
    %v553 = vunpack.c.l.b16 %v290
    %v554 = vunpack.c.l.b16 %v291
    %v555 = vunpack.c.l.b16 %v292
    %v556 = vunpack.c.l.b16 %v293
    %v557 = vunpack.c.l.b16 %v294
    %v558 = vunpack.c.l.b16 %v295
    %v559 = vunpack.c.l.b16 %v296
    %v560 = vunpack.c.l.b16 %v297
    %v561 = vunpack.c.l.b16 %v298
    %v562 = vunpack.c.l.b16 %v299
    %v563 = vunpack.c.l.b16 %v300
    %v564 = vunpack.c.l.b16 %v301
    %v565 = vunpack.c.l.b16 %v302
    %v566 = vunpack.c.l.b16 %v303
    %v567 = vunpack.c.l.b16 %v304
    %v568 = vunpack.c.l.b16 %v305
    %v569 = vunpack.c.l.b16 %v306
    %v570 = vunpack.c.l.b16 %v307
    %v571 = vunpack.c.l.b16 %v308
    %v572 = vunpack.c.l.b16 %v309
    %v573 = vunpack.c.l.b16 %v310
    %v574 = vunpack.c.l.b16 %v311
    %v575 = vunpack.c.l.b16 %v312
    %v576 = vunpack.c.l.b16 %v313
    %v577 = vunpack.c.l.b16 %v314
    %v578 = vunpack.c.l.b16 %v315
    %v579 = vunpack.c.l.b16 %v316
    %v580 = vunpack.c.l.b16 %v317
    %v581 = vunpack.c.l.b16 %v318
    %v582 = vunpack.c.l.b16 %v319
    %v583 = vunpack.c.l.b16 %v320
    %v584 = vunpack.c.l.b16 %v321
    %v585 = vunpack.c.l.b16 %v322
    %v586 = vunpack.c.l.b16 %v323
    %v587 = vunpack.c.l.b16 %v324
    %v588 = vunpack.c.l.b16 %v325
    %v589 = vunpack.c.l.b16 %v326
    %v590 = vunpack.c.l.b16 %v327
    %v591 = vunpack.c.l.b16 %v328
    %v592 = vunpack.c.l.b16 %v329
    %v593 = vunpack.c.l.b16 %v330
    %v594 = vunpack.c.l.b16 %v331
    %v595 = vunpack.c.l.b16 %v332
    %v596 = vunpack.c.l.b16 %v333
    %v597 = vunpack.c.l.b16 %v334
    %v598 = vunpack.c.l.b16 %v335
    %v599 = vunpack.c.l.b16 %v336
    %v600 = vunpack.c.l.b16 %v337
    %v601 = vunpack.c.l.b16 %v338
    %v602 = vunpack.c.l.b16 %v339
    %v603 = vunpack.c.l.b16 %v340
    %v604 = vunpack.c.l.b16 %v341
    %v605 = vunpack.c.l.b16 %v342
    %v606 = vunpack.c.l.b16 %v343
    %v607 = vunpack.c.l.b16 %v344
    %v608 = vunpack.c.l.b16 %v345
    %v609 = vunpack.c.l.b16 %v346
    %v610 = vunpack.c.l.b16 %v347
    %v611 = vunpack.c.l.b16 %v348
    %v612 = vunpack.c.l.b16 %v349
    %v613 = vunpack.c.l.b16 %v350
    %v614 = vunpack.c.l.b16 %v351
    %v615 = vunpack.c.l.b16 %v352
    %v616 = vunpack.c.l.b16 %v353
    %v617 = vunpack.c.l.b16 %v354
    %v618 = vunpack.c.l.b16 %v355
    %v619 = vunpack.c.l.b16 %v356
    %v620 = vunpack.c.l.b16 %v357
    %v621 = vunpack.c.l.b16 %v358
    %v622 = vunpack.c.l.b16 %v359
    %v623 = vunpack.c.l.b16 %v360
    %v624 = vunpack.c.l.b16 %v361
    %v625 = vunpack.c.l.b16 %v362
    %v626 = vunpack.c.l.b16 %v363
    %v627 = vunpack.c.l.b16 %v364
    %v628 = vunpack.c.l.b16 %v365
    %v629 = vunpack.c.l.b16 %v366
    %v630 = vunpack.c.l.b16 %v367
    %v631 = vunpack.c.l.b16 %v368
    %v632 = vunpack.c.l.b16 %v369
    %v633 = vpack.c.b16 %v506, %v505
    %v634 = vpack.c.b16 %v508, %v507
    %v635 = vpack.c.b16 %v510, %v509
    %v636 = vpack.c.b16 %v512, %v511
    %v637 = vpack.c.b16 %v514, %v513
    %v638 = vpack.c.b16 %v516, %v515
    %v639 = vpack.c.b16 %v518, %v517
    %v640 = vpack.c.b16 %v520, %v519
    %v641 = vpack.c.b16 %v522, %v521
    %v642 = vpack.c.b16 %v524, %v523
    %v643 = vpack.c.b16 %v526, %v525
    %v644 = vpack.c.b16 %v528, %v527
    %v645 = vpack.c.b16 %v530, %v529
    %v646 = vpack.c.b16 %v532, %v531
    %v647 = vpack.c.b16 %v534, %v533
    %v648 = vpack.c.b16 %v536, %v535
    %v649 = vpack.c.b16 %v538, %v537
    %v650 = vpack.c.b16 %v540, %v539
    %v651 = vpack.c.b16 %v542, %v541
    %v652 = vpack.c.b16 %v544, %v543
    %v653 = vpack.c.b16 %v546, %v545
    %v654 = vpack.c.b16 %v548, %v547
    %v655 = vpack.c.b16 %v550, %v549
    %v656 = vpack.c.b16 %v552, %v551
    %v657 = vpack.c.b16 %v554, %v553
    %v658 = vpack.c.b16 %v556, %v555
    %v659 = vpack.c.b16 %v558, %v557
    %v660 = vpack.c.b16 %v560, %v559
    %v661 = vpack.c.b16 %v562, %v561
    %v662 = vpack.c.b16 %v564, %v563
    %v663 = vpack.c.b16 %v566, %v565
    %v664 = vpack.c.b16 %v568, %v567
    %v665 = vpack.c.b16 %v570, %v569
    %v666 = vpack.c.b16 %v572, %v571
    %v667 = vpack.c.b16 %v574, %v573
    %v668 = vpack.c.b16 %v576, %v575
    %v669 = vpack.c.b16 %v578, %v577
    %v670 = vpack.c.b16 %v580, %v579
    %v671 = vpack.c.b16 %v582, %v581
    %v672 = vpack.c.b16 %v584, %v583
    %v673 = vpack.c.b16 %v586, %v585
    %v674 = vpack.c.b16 %v588, %v587
    %v675 = vpack.c.b16 %v590, %v589
    %v676 = vpack.c.b16 %v592, %v591
    %v677 = vpack.c.b16 %v594, %v593
    %v678 = vpack.c.b16 %v596, %v595
    %v679 = vpack.c.b16 %v598, %v597
    %v680 = vpack.c.b16 %v600, %v599
    %v681 = vpack.c.b16 %v602, %v601
    %v682 = vpack.c.b16 %v604, %v603
    %v683 = vpack.c.b16 %v606, %v605
    %v684 = vpack.c.b16 %v608, %v607
    %v685 = vpack.c.b16 %v610, %v609
    %v686 = vpack.c.b16 %v612, %v611
    %v687 = vpack.c.b16 %v614, %v613
    %v688 = vpack.c.b16 %v616, %v615
    %v689 = vpack.c.b16 %v618, %v617
    %v690 = vpack.c.b16 %v620, %v619
    %v691 = vpack.c.b16 %v622, %v621
    %v692 = vpack.c.b16 %v624, %v623
    %v693 = vpack.c.b16 %v626, %v625
    %v694 = vpack.c.b16 %v628, %v627
    %v695 = vpack.c.b16 %v630, %v629
    %v696 = vpack.c.b16 %v632, %v631
    %761 = vmatprep.subr.bf16.mxu0 0
    %762 = vmatpush1.bf16.msra.mxu0 %v633
    %763 = vmatprep.subr.bf16.mxu0 0
    %764 = vmatpush1.bf16.msra.mxu0 %v634
    %765 = vmatprep.subr.bf16.mxu0 0
    %766 = vmatpush1.bf16.msra.mxu0 %v635
    %767 = vmatprep.subr.bf16.mxu0 0
    %768 = vmatpush1.bf16.msra.mxu0 %v636
    %769 = vmatprep.subr.bf16.mxu0 0
    %770 = vmatpush1.bf16.msra.mxu0 %v637
    %771 = vmatprep.subr.bf16.mxu0 0
    %772 = vmatpush1.bf16.msra.mxu0 %v638
    %773 = vmatprep.subr.bf16.mxu0 0
    %774 = vmatpush1.bf16.msra.mxu0 %v639
    %775 = vmatprep.subr.bf16.mxu0 0
    %776 = vmatpush1.bf16.msra.mxu0 %v640
    %777 = vmatprep.subr.bf16.mxu0 0
    %778 = vmatpush1.bf16.msra.mxu0 %v641
    %779 = vmatprep.subr.bf16.mxu0 0
    %780 = vmatpush1.bf16.msra.mxu0 %v642
    %781 = vmatprep.subr.bf16.mxu0 0
    %782 = vmatpush1.bf16.msra.mxu0 %v643
    %783 = vmatprep.subr.bf16.mxu0 0
    %784 = vmatpush1.bf16.msra.mxu0 %v644
    %785 = vmatprep.subr.bf16.mxu0 0
    %786 = vmatpush1.bf16.msra.mxu0 %v645
    %787 = vmatprep.subr.bf16.mxu0 0
    %788 = vmatpush1.bf16.msra.mxu0 %v646
    %789 = vmatprep.subr.bf16.mxu0 0
    %790 = vmatpush1.bf16.msra.mxu0 %v647
    %791 = vmatprep.subr.bf16.mxu0 0
    %792 = vmatpush1.bf16.msra.mxu0 %v648
    %793 = vmatprep.mubr.bf16.mxu0 %v235
    %794 = vmatmul.mubr.bf16.gmra.mrb[0].mxu0 %v234
    %v795 = vpop.f32.mrb[0].mxu0
    %v796 = vadd.f32 %v375, %v795
    %v797 = vpop.f32.mrb[0].mxu0
    %v798 = vpop.f32.mrb[0].mxu0
    %v799 = vadd.f32 %v375, %v798
    %v800 = vpop.f32.mrb[0].mxu0
    %801 = vdwg.mxu0
    %802 = vmatprep.subr.bf16.mxu0 0
    %803 = vmatpush1.bf16.msra.mxu0 %v649
    %804 = vmatprep.subr.bf16.mxu0 0
    %805 = vmatpush1.bf16.msra.mxu0 %v650
    %806 = vmatprep.subr.bf16.mxu0 0
    %807 = vmatpush1.bf16.msra.mxu0 %v651
    %808 = vmatprep.subr.bf16.mxu0 0
    %809 = vmatpush1.bf16.msra.mxu0 %v652
    %810 = vmatprep.subr.bf16.mxu0 0
    %811 = vmatpush1.bf16.msra.mxu0 %v653
    %812 = vmatprep.subr.bf16.mxu0 0
    %813 = vmatpush1.bf16.msra.mxu0 %v654
    %814 = vmatprep.subr.bf16.mxu0 0
    %815 = vmatpush1.bf16.msra.mxu0 %v655
    %816 = vmatprep.subr.bf16.mxu0 0
    %817 = vmatpush1.bf16.msra.mxu0 %v656
    %818 = vmatprep.subr.bf16.mxu0 0
    %819 = vmatpush1.bf16.msra.mxu0 %v657
    %820 = vmatprep.subr.bf16.mxu0 0
    %821 = vmatpush1.bf16.msra.mxu0 %v658
    %822 = vmatprep.subr.bf16.mxu0 0
    %823 = vmatpush1.bf16.msra.mxu0 %v659
    %824 = vmatprep.subr.bf16.mxu0 0
    %825 = vmatpush1.bf16.msra.mxu0 %v660
    %826 = vmatprep.subr.bf16.mxu0 0
    %827 = vmatpush1.bf16.msra.mxu0 %v661
    %828 = vmatprep.subr.bf16.mxu0 0
    %829 = vmatpush1.bf16.msra.mxu0 %v662
    %830 = vmatprep.subr.bf16.mxu0 0
    %831 = vmatpush1.bf16.msra.mxu0 %v663
    %832 = vmatprep.subr.bf16.mxu0 0
    %833 = vmatpush1.bf16.msra.mxu0 %v664
    %834 = vmatprep.mubr.bf16.mxu0 %v237
    %835 = vmatmul.mubr.bf16.gmra.mrb[0].mxu0 %v236
    %v836 = vpop.f32.mrb[0].mxu0
    %v837 = vadd.f32 %v796, %v836
    %v838 = vpop.f32.mrb[0].mxu0
    %v839 = vpop.f32.mrb[0].mxu0
    %v840 = vadd.f32 %v799, %v839
    %v841 = vpop.f32.mrb[0].mxu0
    %842 = vdwg.mxu0
    %843 = vmatprep.subr.bf16.mxu0 0
    %844 = vmatpush1.bf16.msra.mxu0 %v665
    %845 = vmatprep.subr.bf16.mxu0 0
    %846 = vmatpush1.bf16.msra.mxu0 %v666
    %847 = vmatprep.subr.bf16.mxu0 0
    %848 = vmatpush1.bf16.msra.mxu0 %v667
    %849 = vmatprep.subr.bf16.mxu0 0
    %850 = vmatpush1.bf16.msra.mxu0 %v668
    %851 = vmatprep.subr.bf16.mxu0 0
    %852 = vmatpush1.bf16.msra.mxu0 %v669
    %853 = vmatprep.subr.bf16.mxu0 0
    %854 = vmatpush1.bf16.msra.mxu0 %v670
    %855 = vmatprep.subr.bf16.mxu0 0
    %856 = vmatpush1.bf16.msra.mxu0 %v671
    %857 = vmatprep.subr.bf16.mxu0 0
    %858 = vmatpush1.bf16.msra.mxu0 %v672
    %859 = vmatprep.subr.bf16.mxu0 0
    %860 = vmatpush1.bf16.msra.mxu0 %v673
    %861 = vmatprep.subr.bf16.mxu0 0
    %862 = vmatpush1.bf16.msra.mxu0 %v674
    %863 = vmatprep.subr.bf16.mxu0 0
    %864 = vmatpush1.bf16.msra.mxu0 %v675
    %865 = vmatprep.subr.bf16.mxu0 0
    %866 = vmatpush1.bf16.msra.mxu0 %v676
    %867 = vmatprep.subr.bf16.mxu0 0
    %868 = vmatpush1.bf16.msra.mxu0 %v677
    %869 = vmatprep.subr.bf16.mxu0 0
    %870 = vmatpush1.bf16.msra.mxu0 %v678
    %871 = vmatprep.subr.bf16.mxu0 0
    %872 = vmatpush1.bf16.msra.mxu0 %v679
    %873 = vmatprep.subr.bf16.mxu0 0
    %874 = vmatpush1.bf16.msra.mxu0 %v680
    %875 = vmatprep.mubr.bf16.mxu0 %v239
    %876 = vmatmul.mubr.bf16.gmra.mrb[0].mxu0 %v238
    %v877 = vpop.f32.mrb[0].mxu0
    %v878 = vadd.f32 %v837, %v877
    %v879 = vpop.f32.mrb[0].mxu0
    %v880 = vpop.f32.mrb[0].mxu0
    %v881 = vadd.f32 %v840, %v880
    %v882 = vpop.f32.mrb[0].mxu0
    %883 = vdwg.mxu0
    %884 = vmatprep.subr.bf16.mxu0 0
    %885 = vmatpush1.bf16.msra.mxu0 %v681
    %886 = vmatprep.subr.bf16.mxu0 0
    %887 = vmatpush1.bf16.msra.mxu0 %v682
    %888 = vmatprep.subr.bf16.mxu0 0
    %889 = vmatpush1.bf16.msra.mxu0 %v683
    %890 = vmatprep.subr.bf16.mxu0 0
    %891 = vmatpush1.bf16.msra.mxu0 %v684
    %892 = vmatprep.subr.bf16.mxu0 0
    %893 = vmatpush1.bf16.msra.mxu0 %v685
    %894 = vmatprep.subr.bf16.mxu0 0
    %895 = vmatpush1.bf16.msra.mxu0 %v686
    %896 = vmatprep.subr.bf16.mxu0 0
    %897 = vmatpush1.bf16.msra.mxu0 %v687
    %898 = vmatprep.subr.bf16.mxu0 0
    %899 = vmatpush1.bf16.msra.mxu0 %v688
    %900 = vmatprep.subr.bf16.mxu0 0
    %901 = vmatpush1.bf16.msra.mxu0 %v689
    %902 = vmatprep.subr.bf16.mxu0 0
    %903 = vmatpush1.bf16.msra.mxu0 %v690
    %904 = vmatprep.subr.bf16.mxu0 0
    %905 = vmatpush1.bf16.msra.mxu0 %v691
    %906 = vmatprep.subr.bf16.mxu0 0
    %907 = vmatpush1.bf16.msra.mxu0 %v692
    %908 = vmatprep.subr.bf16.mxu0 0
    %909 = vmatpush1.bf16.msra.mxu0 %v693
    %910 = vmatprep.subr.bf16.mxu0 0
    %911 = vmatpush1.bf16.msra.mxu0 %v694
    %912 = vmatprep.subr.bf16.mxu0 0
    %913 = vmatpush1.bf16.msra.mxu0 %v695
    %914 = vmatprep.subr.bf16.mxu0 0
    %915 = vmatpush1.bf16.msra.mxu0 %v696
    %916 = vmatprep.mubr.bf16.mxu0 %v241
    %917 = vmatmul.mubr.bf16.gmra.mrb[0].mxu0 %v240
    %v918 = vpop.f32.mrb[0].mxu0
    %v919 = vadd.f32 %v878, %v918
    %v920 = vpop.f32.mrb[0].mxu0
    %v921 = vpop.f32.mrb[0].mxu0
    %v922 = vadd.f32 %v881, %v921
    %v923 = vpop.f32.mrb[0].mxu0
    %924 = vdwg.mxu0
    %v925 = vmax.f32 %v919, 0.0
    %v926 = vmax.f32 %v922, 0.0
    %v927 = vpack.c.bf16 %v926, %v925
    %v928 = vld [vmem:[%s3] sm:$0xf]
    %v929 = vld [vmem:[%s3 + $0x4] sm:$0xf]
    %v930 = vld [vmem:[%s3 + $0x8] sm:$0xf]
    %v931 = vld [vmem:[%s3 + $0xc] sm:$0xf]
    %v932 = vld [vmem:[%s3 + $0x10] sm:$0xf]
    %v933 = vld [vmem:[%s3 + $0x14] sm:$0xf]
    %v934 = vld [vmem:[%s3 + $0x18] sm:$0xf]
    %v935 = vld [vmem:[%s3 + $0x1c] sm:$0xf]
    %v936 = vld [vmem:[%s3 + $0x20] sm:$0xf]
    %v937 = vld [vmem:[%s3 + $0x24] sm:$0xf]
    %v938 = vld [vmem:[%s3 + $0x28] sm:$0xf]
    %v939 = vld [vmem:[%s3 + $0x2c] sm:$0xf]
    %v940 = vld [vmem:[%s3 + $0x30] sm:$0xf]
    %v941 = vld [vmem:[%s3 + $0x34] sm:$0xf]
    %v942 = vld [vmem:[%s3 + $0x38] sm:$0xf]
    %v943 = vld [vmem:[%s3 + $0x3c] sm:$0xf]
    %v944 = vld [vmem:[%s4] sm:$0x1]
    %v946 = vlaneseq
    %v947 = vshrl.u32 %v946, 7
    %v948 = vsub.s32 0, %v947
    %v949 = vrot.slane %v944, %v948
    %v967 = vunpack.c.l.b16 %v928
    %v968 = vunpack.c.l.b16 %v929
    %v969 = vunpack.c.l.b16 %v930
    %v970 = vunpack.c.l.b16 %v931
    %v971 = vunpack.c.l.b16 %v932
    %v972 = vunpack.c.l.b16 %v933
    %v973 = vunpack.c.l.b16 %v934
    %v974 = vunpack.c.l.b16 %v935
    %v975 = vunpack.c.l.b16 %v936
    %v976 = vunpack.c.l.b16 %v937
    %v977 = vunpack.c.l.b16 %v938
    %v978 = vunpack.c.l.b16 %v939
    %v979 = vunpack.c.l.b16 %v940
    %v980 = vunpack.c.l.b16 %v941
    %v981 = vunpack.c.l.b16 %v942
    %v982 = vunpack.c.l.b16 %v943
    %v983 = vpack.c.b16 %v968, %v967
    %v984 = vpack.c.b16 %v970, %v969
    %v985 = vpack.c.b16 %v972, %v971
    %v986 = vpack.c.b16 %v974, %v973
    %v987 = vpack.c.b16 %v976, %v975
    %v988 = vpack.c.b16 %v978, %v977
    %v989 = vpack.c.b16 %v980, %v979
    %v990 = vpack.c.b16 %v982, %v981
    %999 = vmatprep.subr.bf16.mxu0 0
    %1000 = vmatpush1.bf16.msra.mxu0 %v983
    %1001 = vmatprep.subr.bf16.mxu0 0
    %1002 = vmatpush1.bf16.msra.mxu0 %v984
    %1003 = vmatprep.subr.bf16.mxu0 0
    %1004 = vmatpush1.bf16.msra.mxu0 %v985
    %1005 = vmatprep.subr.bf16.mxu0 0
    %1006 = vmatpush1.bf16.msra.mxu0 %v986
    %1007 = vmatprep.subr.bf16.mxu0 0
    %1008 = vmatpush1.bf16.msra.mxu0 %v987
    %1009 = vmatprep.subr.bf16.mxu0 0
    %1010 = vmatpush1.bf16.msra.mxu0 %v988
    %1011 = vmatprep.subr.bf16.mxu0 0
    %1012 = vmatpush1.bf16.msra.mxu0 %v989
    %1013 = vmatprep.subr.bf16.mxu0 0
    %1014 = vmatpush1.bf16.msra.mxu0 %v990
    %1015 = vmatprep.subr.bf16.mxu0 0
    %1016 = vmatpush1.bf16.msra.mxu0 0
    %1017 = vmatprep.subr.bf16.mxu0 0
    %1018 = vmatpush1.bf16.msra.mxu0 0
    %1019 = vmatprep.subr.bf16.mxu0 0
    %1020 = vmatpush1.bf16.msra.mxu0 0
    %1021 = vmatprep.subr.bf16.mxu0 0
    %1022 = vmatpush1.bf16.msra.mxu0 0
    %1023 = vmatprep.subr.bf16.mxu0 0
    %1024 = vmatpush1.bf16.msra.mxu0 0
    %1025 = vmatprep.subr.bf16.mxu0 0
    %1026 = vmatpush1.bf16.msra.mxu0 0
    %1027 = vmatprep.subr.bf16.mxu0 0
    %1028 = vmatpush1.bf16.msra.mxu0 0
    %1029 = vmatprep.subr.bf16.mxu0 0
    %1030 = vmatpush1.bf16.msra.mxu0 0
    %1031 = vmatprep.mubr.bf16.mxu0 0
    %1032 = vmatmul.mubr.bf16.gmra.mrb[0].mxu0 %v927
    %v1033 = vpop.f32.mrb[0].mxu0
    %v1034 = vadd.f32 %v949, %v1033
    %v1035 = vpop.f32.mrb[0].mxu0
    %v1036 = vpop.f32.mrb[0].mxu0
    %v1037 = vadd.f32 %v949, %v1036
    %v1038 = vpop.f32.mrb[0].mxu0
    %1039 = vdwg.mxu0
    %v1040 = vmax.f32 %v1034, 0.0
    %v1041 = vmax.f32 %v1037, 0.0
    %v1042 = vpack.c.bf16 %v1041, %v1040
    %v1043 = vld [vmem:[%s5] sm:$0xf]
    %v1044 = vld [vmem:[%s5 + $0x4] sm:$0xf]
    %v1045 = vld [vmem:[%s5 + $0x8] sm:$0xf]
    %v1046 = vld [vmem:[%s5 + $0xc] sm:$0xf]
    %v1047 = vld [vmem:[%s5 + $0x10] sm:$0xf]
    %v1048 = vld [vmem:[%s5 + $0x14] sm:$0xf]
    %v1049 = vld [vmem:[%s5 + $0x18] sm:$0xf]
    %v1050 = vld [vmem:[%s5 + $0x1c] sm:$0xf]
    %v1051 = vld [vmem:[%s5 + $0x20] sm:$0xf]
    %v1052 = vld [vmem:[%s5 + $0x24] sm:$0xf]
    %v1053 = vld [vmem:[%s5 + $0x28] sm:$0xf]
    %v1054 = vld [vmem:[%s5 + $0x2c] sm:$0xf]
    %v1055 = vld [vmem:[%s5 + $0x30] sm:$0xf]
    %v1056 = vld [vmem:[%s5 + $0x34] sm:$0xf]
    %v1057 = vld [vmem:[%s5 + $0x38] sm:$0xf]
    %v1058 = vld [vmem:[%s5 + $0x3c] sm:$0xf]
    %v1059 = vld [vmem:[%s6] sm:$0x1]
    %v1061 = vlaneseq
    %v1062 = vshrl.u32 %v1061, 7
    %v1063 = vsub.s32 0, %v1062
    %v1064 = vrot.slane %v1059, %v1063
    %v1082 = vunpack.c.l.b16 %v1043
    %v1083 = vunpack.c.l.b16 %v1044
    %v1084 = vunpack.c.l.b16 %v1045
    %v1085 = vunpack.c.l.b16 %v1046
    %v1086 = vunpack.c.l.b16 %v1047
    %v1087 = vunpack.c.l.b16 %v1048
    %v1088 = vunpack.c.l.b16 %v1049
    %v1089 = vunpack.c.l.b16 %v1050
    %v1090 = vunpack.c.l.b16 %v1051
    %v1091 = vunpack.c.l.b16 %v1052
    %v1092 = vunpack.c.l.b16 %v1053
    %v1093 = vunpack.c.l.b16 %v1054
    %v1094 = vunpack.c.l.b16 %v1055
    %v1095 = vunpack.c.l.b16 %v1056
    %v1096 = vunpack.c.l.b16 %v1057
    %v1097 = vunpack.c.l.b16 %v1058
    %v1098 = vpack.c.b16 %v1083, %v1082
    %v1099 = vpack.c.b16 %v1085, %v1084
    %v1100 = vpack.c.b16 %v1087, %v1086
    %v1101 = vpack.c.b16 %v1089, %v1088
    %v1102 = vpack.c.b16 %v1091, %v1090
    %v1103 = vpack.c.b16 %v1093, %v1092
    %v1104 = vpack.c.b16 %v1095, %v1094
    %v1105 = vpack.c.b16 %v1097, %v1096
    %1114 = vmatprep.subr.bf16.mxu0 0
    %1115 = vmatpush1.bf16.msra.mxu0 %v1098
    %1116 = vmatprep.subr.bf16.mxu0 0
    %1117 = vmatpush1.bf16.msra.mxu0 %v1099
    %1118 = vmatprep.subr.bf16.mxu0 0
    %1119 = vmatpush1.bf16.msra.mxu0 %v1100
    %1120 = vmatprep.subr.bf16.mxu0 0
    %1121 = vmatpush1.bf16.msra.mxu0 %v1101
    %1122 = vmatprep.subr.bf16.mxu0 0
    %1123 = vmatpush1.bf16.msra.mxu0 %v1102
    %1124 = vmatprep.subr.bf16.mxu0 0
    %1125 = vmatpush1.bf16.msra.mxu0 %v1103
    %1126 = vmatprep.subr.bf16.mxu0 0
    %1127 = vmatpush1.bf16.msra.mxu0 %v1104
    %1128 = vmatprep.subr.bf16.mxu0 0
    %1129 = vmatpush1.bf16.msra.mxu0 %v1105
    %1130 = vmatprep.subr.bf16.mxu0 0
    %1131 = vmatpush1.bf16.msra.mxu0 0
    %1132 = vmatprep.subr.bf16.mxu0 0
    %1133 = vmatpush1.bf16.msra.mxu0 0
    %1134 = vmatprep.subr.bf16.mxu0 0
    %1135 = vmatpush1.bf16.msra.mxu0 0
    %1136 = vmatprep.subr.bf16.mxu0 0
    %1137 = vmatpush1.bf16.msra.mxu0 0
    %1138 = vmatprep.subr.bf16.mxu0 0
    %1139 = vmatpush1.bf16.msra.mxu0 0
    %1140 = vmatprep.subr.bf16.mxu0 0
    %1141 = vmatpush1.bf16.msra.mxu0 0
    %1142 = vmatprep.subr.bf16.mxu0 0
    %1143 = vmatpush1.bf16.msra.mxu0 0
    %1144 = vmatprep.subr.bf16.mxu0 0
    %1145 = vmatpush1.bf16.msra.mxu0 0
    %1146 = vmatprep.mubr.bf16.mxu0 0
    %1147 = vmatmul.mubr.bf16.gmra.mrb[0].mxu0 %v1042
    %v1148 = vpop.f32.mrb[0].mxu0
    %v1149 = vadd.f32 %v1064, %v1148
    %v1150 = vpop.f32.mrb[0].mxu0
    %v1151 = vpop.f32.mrb[0].mxu0
    %v1152 = vadd.f32 %v1064, %v1151
    %v1153 = vpop.f32.mrb[0].mxu0
    %1154 = vdwg.mxu0
    %1155 = vst [vmem:[#allocation5] sm:$0xff] %v1149
    %1156 = vst [vmem:[#allocation5 + $0x8] sm:$0xff] %v1152
    // Predicated region
    $region34: #{mlp_forward.1} parent=1 // pred_check
      _
    $region35: #{mlp_forward.1} parent=1 // pred_check_branch
      %1158 = sbr.rel (0) target = $region37
    $region36: #{mlp_forward.1} parent=1 // pred_region
      %s1160 = ssub.s32 256, 32
      %1161 = vsyncadd [#allocation4], %s1160
      %s1162 = sshll.u32 [#allocation5], 4
      %s1163 = int_to_ptr.vmem [resolvable:$true] %s1162
      %1168 = dma.vmem_to_hbm [thread:$0]  %s1163, 32, %s7, [#allocation4], 32, 32, 2
    $region37: #{mlp_forward.1} parent=1 // pred_fallthru
      _
    // Predicated region
    $region38: #{mlp_forward.1} parent=1 // pred_check
      _
    $region39: #{mlp_forward.1} parent=1 // pred_check_branch
      %1170 = sbr.rel (0) target = $region41
    $region40: #{mlp_forward.1} parent=1 // pred_region
      %1171 = dma.done [#allocation4], 256
    $region41: #{mlp_forward.1} parent=1 // pred_fallthru
      _
    %1172 = vsyncpa [#allocation3], 1
    %1173 = vsyncpa [#allocation4], 1

</llo_original>
